<compile_context>
chip_gen: v7x
topology: tpu7x:2x2x1
jax: 0.10.0
libtpu: 0.0.40
codegen_flags: <defaults>
</compile_context>

<pallas_src>
import math

import jax
import jax.numpy as jnp
from jax.experimental import pallas as pl
from jax.experimental.pallas import tpu as pltpu

LOG_SIG_MAX = 2.0
LOG_SIG_MIN = -20.0


def _round_up(x, m):
    return (x + m - 1) // m * m


def _policy_kernel(x_ref, w1_ref, b1_ref, w2_ref, b2_ref, wh_ref, bh_ref,
                   mean_ref, logstd_ref):
    x = x_ref[...]

    # linear1 + relu (f32 accumulation on the MXU)
    h = jnp.dot(x, w1_ref[...], preferred_element_type=jnp.float32) + b1_ref[...]
    h = jnp.maximum(h, 0.0)

    # linear2 + relu
    h = jnp.dot(h.astype(w2_ref.dtype), w2_ref[...],
                preferred_element_type=jnp.float32) + b2_ref[...]
    h = jnp.maximum(h, 0.0)

    # fused mean / log_std heads: a single lane-dense [tile_b, 2*NP] matmul
    head = jnp.dot(h.astype(wh_ref.dtype), wh_ref[...],
                   preferred_element_type=jnp.float32) + bh_ref[...]

    np_lanes = mean_ref.shape[-1]                 # padded num_actions (x128)
    mean_ref[...] = head[:, :np_lanes].astype(mean_ref.dtype)
    logstd_ref[...] = jnp.clip(head[:, np_lanes:], LOG_SIG_MIN,
                               LOG_SIG_MAX).astype(logstd_ref.dtype)


def gaussian_policy_forward(state, params, *, tile_b=128,
                            compute_dtype=jnp.float32):
    """state: [B, num_inputs] f32. params: transposed ([in, out]) weights.

    Returns (mean, log_std), each [B, num_actions] f32 — same semantics as
    GaussianPolicy.forward.  Use compute_dtype=jnp.bfloat16 on v6e/v7x for the
    bf16 MXU fast path; on v7x prefer tile_b <= 1024 (64 MiB VMEM).
    """
    B, ni = state.shape
    hid = params["w1"].shape[1]
    na = params["w_mean"].shape[1]

    hp = _round_up(hid, 128)      # lane-pad hidden width -> full MXU pushes
    npad = _round_up(na, 128)     # lane-pad each head -> unmasked vst stores

    f32 = jnp.float32
    cdt = compute_dtype

    # Zero-padding is exact: padded hidden units are relu(0)=0 and padded W2
    # rows multiply zeros, so results match the unpadded network bit-for-bit.
    w1 = jnp.zeros((ni, hp), cdt).at[:, :hid].set(params["w1"].astype(cdt))
    b1 = jnp.zeros((1, hp), f32).at[:, :hid].set(params["b1"].astype(f32))
    w2 = jnp.zeros((hp, hp), cdt).at[:hid, :hid].set(params["w2"].astype(cdt))
    b2 = jnp.zeros((1, hp), f32).at[:, :hid].set(params["b2"].astype(f32))

    # Both heads concatenated along the output (lane) axis.
    wh = jnp.zeros((hp, 2 * npad), cdt)
    wh = wh.at[:hid, :na].set(params["w_mean"].astype(cdt))
    wh = wh.at[:hid, npad:npad + na].set(params["w_logstd"].astype(cdt))
    bh = jnp.zeros((1, 2 * npad), f32)
    bh = bh.at[:, :na].set(params["b_mean"].astype(f32))
    bh = bh.at[:, npad:npad + na].set(params["b_logstd"].astype(f32))

    # Batch tiling: sublane count multiple of 8; pad B up to the tile size.
    tile_b = max(8, min(tile_b, _round_up(B, 8)))
    bp = _round_up(B, tile_b)
    x = state.astype(cdt)
    if bp != B:
        x = jnp.zeros((bp, ni), cdt).at[:B, :].set(x)

    grid = (bp // tile_b,)

    def batch_spec(lanes):
        return pl.BlockSpec((tile_b, lanes), lambda i: (i, 0))

    def resident(shape):
        # constant block index -> DMA'd once, stays VMEM-resident across steps
        return pl.BlockSpec(shape, lambda i: (0, 0))

    itemsize = jnp.dtype(cdt).itemsize
    weight_elems = ni * hp + hp * hp + hp * 2 * npad
    cost = pl.CostEstimate(
        flops=2 * bp * (ni * hp + hp * hp + hp * 2 * npad),
        transcendentals=0,
        bytes_accessed=bp * ni * itemsize
        + weight_elems * itemsize
        + 2 * bp * npad * 4,
    )

    mean_p, logstd_p = pl.pallas_call(
        _policy_kernel,
        grid=grid,
        out_shape=(jax.ShapeDtypeStruct((bp, npad), f32),
                   jax.ShapeDtypeStruct((bp, npad), f32)),
        in_specs=[
            batch_spec(ni),                                    # state (pipelined)
            resident((ni, hp)), resident((1, hp)),             # W1, b1
            resident((hp, hp)), resident((1, hp)),             # W2, b2
            resident((hp, 2 * npad)), resident((1, 2 * npad)),  # fused heads
        ],
        out_specs=(batch_spec(npad), batch_spec(npad)),
        compiler_params=pltpu.CompilerParams(
            dimension_semantics=("parallel",),   # batch axis -> both TCs on v7x
            vmem_limit_bytes=32 * 1024 * 1024,
        ),
        cost_estimate=cost,
    )(x, w1, b1, w2, b2, wh, bh)

    return mean_p[:B, :na], logstd_p[:B, :na]


def _xavier_uniform(key, fan_in, fan_out):
    # matches torch.nn.init.xavier_uniform_ (gain=1), generated directly in the
    # transposed [in, out] layout used by the kernel.
    limit = math.sqrt(6.0 / (fan_in + fan_out))
    return jax.random.uniform(key, (fan_in, fan_out), jnp.float32, -limit, limit)


def init_params(key, num_inputs, num_actions, hidden_dim):
    k1, k2, k3, k4 = jax.random.split(key, 4)
    return {
        "w1": _xavier_uniform(k1, num_inputs, hidden_dim),
        "b1": jnp.zeros((1, hidden_dim), jnp.float32),
        "w2": _xavier_uniform(k2, hidden_dim, hidden_dim),
        "b2": jnp.zeros((1, hidden_dim), jnp.float32),
        "w_mean": _xavier_uniform(k3, hidden_dim, num_actions),
        "b_mean": jnp.zeros((1, num_actions), jnp.float32),
        "w_logstd": _xavier_uniform(k4, hidden_dim, num_actions),
        "b_logstd": jnp.zeros((1, num_actions), jnp.float32),
    }


def _reference_forward(state, params):
    x = jnp.maximum(state @ params["w1"] + params["b1"], 0.0)
    x = jnp.maximum(x @ params["w2"] + params["b2"], 0.0)
    mean = x @ params["w_mean"] + params["b_mean"]
    log_std = jnp.clip(x @ params["w_logstd"] + params["b_logstd"],
                       LOG_SIG_MIN, LOG_SIG_MAX)
    return mean, log_std


# TODO(synk): GaussianPolicy.sample() (Normal rsample / log_prob / tanh squash)
# is host-side distribution logic and is not part of forward(); not kernelized.

if __name__ == "__main__":
    num_inputs, num_actions, hidden_dim = 16, 8, 32
    batch = 256

    key = jax.random.PRNGKey(0)
    k_params, k_state = jax.random.split(key)

    params = init_params(k_params, num_inputs, num_actions, hidden_dim)
    state = jax.random.normal(k_state, (batch, num_inputs), jnp.float32)

    mean, log_std = gaussian_policy_forward(state, params, tile_b=128)
    mean, log_std = jax.block_until_ready((mean, log_std))

    ref_mean, ref_log_std = _reference_forward(state, params)
    assert mean.shape == (batch, num_actions)
    assert log_std.shape == (batch, num_actions)
    assert jnp.allclose(mean, ref_mean, atol=1e-4, rtol=1e-4), "mean mismatch"
    assert jnp.allclose(log_std, ref_log_std, atol=1e-4, rtol=1e-4), "log_std mismatch"

    print("KERNEL_OK")
</pallas_src>

<mosaic_0001>
module attributes {stable_mosaic.version = 11 : i64} {
  func.func @_policy_kernel(%arg0: i32, %arg1: memref<128x16xf32, #tpu.memory_space<vmem>>, %arg2: memref<16x128xf32, #tpu.memory_space<vmem>>, %arg3: memref<1x128xf32, #tpu.memory_space<vmem>>, %arg4: memref<128x128xf32, #tpu.memory_space<vmem>>, %arg5: memref<1x128xf32, #tpu.memory_space<vmem>>, %arg6: memref<128x256xf32, #tpu.memory_space<vmem>>, %arg7: memref<1x256xf32, #tpu.memory_space<vmem>>, %arg8: memref<128x128xf32, #tpu.memory_space<vmem>>, %arg9: memref<128x128xf32, #tpu.memory_space<vmem>>) attributes {dimension_semantics = [#tpu.dimension_semantics<parallel>], iteration_bounds = array<i64: 2>, scalar_prefetch = 0 : i64, scratch_operands = 0 : i64, tpu.core_type = #tpu.core_type<tc>, window_params = [{transform_indices = @transform_0, window_bounds = array<i64: 128, 16>}, {pipeline_mode = #tpu.pipeline_mode<synchronous>, transform_indices = @transform_1, window_bounds = array<i64: 16, 128>}, {pipeline_mode = #tpu.pipeline_mode<synchronous>, transform_indices = @transform_2, window_bounds = array<i64: 1, 128>}, {pipeline_mode = #tpu.pipeline_mode<synchronous>, transform_indices = @transform_3, window_bounds = array<i64: 128, 128>}, {pipeline_mode = #tpu.pipeline_mode<synchronous>, transform_indices = @transform_4, window_bounds = array<i64: 1, 128>}, {pipeline_mode = #tpu.pipeline_mode<synchronous>, transform_indices = @transform_5, window_bounds = array<i64: 128, 256>}, {pipeline_mode = #tpu.pipeline_mode<synchronous>, transform_indices = @transform_6, window_bounds = array<i64: 1, 256>}, {transform_indices = @transform_7, window_bounds = array<i64: 128, 128>}, {transform_indices = @transform_8, window_bounds = array<i64: 128, 128>}]} {
    %c0 = arith.constant 0 : index
    %c0_0 = arith.constant 0 : index
    %0 = vector.load %arg1[%c0, %c0_0] : memref<128x16xf32, #tpu.memory_space<vmem>>, vector<128x16xf32>
    %c0_1 = arith.constant 0 : index
    %c0_2 = arith.constant 0 : index
    %1 = vector.load %arg2[%c0_1, %c0_2] : memref<16x128xf32, #tpu.memory_space<vmem>>, vector<16x128xf32>
    %cst = arith.constant dense<0.000000e+00> : vector<128x128xf32>
    %2 = tpu.matmul %0, %1, %cst {dimension_numbers = #tpu.dot_dimension_numbers<[1], [0], [0], [1], [0, 0, 1, 1], [], []>} : vector<128x16xf32>, vector<16x128xf32>, vector<128x128xf32> -> vector<128x128xf32>
    %c0_3 = arith.constant 0 : index
    %c0_4 = arith.constant 0 : index
    %3 = vector.load %arg3[%c0_3, %c0_4] : memref<1x128xf32, #tpu.memory_space<vmem>>, vector<1x128xf32>
    %4 = vector.broadcast %3 : vector<1x128xf32> to vector<128x128xf32>
    %5 = arith.addf %2, %4 : vector<128x128xf32>
    %cst_5 = arith.constant 0.000000e+00 : f32
    %6 = vector.broadcast %cst_5 : f32 to vector<128x128xf32>
    %7 = arith.maximumf %5, %6 : vector<128x128xf32>
    %c0_6 = arith.constant 0 : index
    %c0_7 = arith.constant 0 : index
    %8 = vector.load %arg4[%c0_6, %c0_7] : memref<128x128xf32, #tpu.memory_space<vmem>>, vector<128x128xf32>
    %cst_8 = arith.constant dense<0.000000e+00> : vector<128x128xf32>
    %9 = tpu.matmul %7, %8, %cst_8 {dimension_numbers = #tpu.dot_dimension_numbers<[1], [0], [0], [1], [0, 0, 1, 1], [], []>} : vector<128x128xf32>, vector<128x128xf32>, vector<128x128xf32> -> vector<128x128xf32>
    %c0_9 = arith.constant 0 : index
    %c0_10 = arith.constant 0 : index
    %10 = vector.load %arg5[%c0_9, %c0_10] : memref<1x128xf32, #tpu.memory_space<vmem>>, vector<1x128xf32>
    %11 = vector.broadcast %10 : vector<1x128xf32> to vector<128x128xf32>
    %12 = arith.addf %9, %11 : vector<128x128xf32>
    %cst_11 = arith.constant 0.000000e+00 : f32
    %13 = vector.broadcast %cst_11 : f32 to vector<128x128xf32>
    %14 = arith.maximumf %12, %13 : vector<128x128xf32>
    %c0_12 = arith.constant 0 : index
    %c0_13 = arith.constant 0 : index
    %15 = vector.load %arg6[%c0_12, %c0_13] : memref<128x256xf32, #tpu.memory_space<vmem>>, vector<128x256xf32>
    %cst_14 = arith.constant dense<0.000000e+00> : vector<128x256xf32>
    %16 = tpu.matmul %14, %15, %cst_14 {dimension_numbers = #tpu.dot_dimension_numbers<[1], [0], [0], [1], [0, 0, 1, 1], [], []>} : vector<128x128xf32>, vector<128x256xf32>, vector<128x256xf32> -> vector<128x256xf32>
    %c0_15 = arith.constant 0 : index
    %c0_16 = arith.constant 0 : index
    %17 = vector.load %arg7[%c0_15, %c0_16] : memref<1x256xf32, #tpu.memory_space<vmem>>, vector<1x256xf32>
    %18 = vector.broadcast %17 : vector<1x256xf32> to vector<128x256xf32>
    %19 = arith.addf %16, %18 : vector<128x256xf32>
    %20 = vector.extract_strided_slice %19 {offsets = [0, 0], sizes = [128, 128], strides = [1, 1]} : vector<128x256xf32> to vector<128x128xf32>
    %c0_17 = arith.constant 0 : index
    %c0_18 = arith.constant 0 : index
    %21 = vector.load %arg8[%c0_17, %c0_18] : memref<128x128xf32, #tpu.memory_space<vmem>>, vector<128x128xf32>
    tpu.vector_store %arg8[%c0_17, %c0_18], %20 {strides = array<i32>} : memref<128x128xf32, #tpu.memory_space<vmem>>, vector<128x128xf32>,
    %22 = vector.extract_strided_slice %19 {offsets = [0, 128], sizes = [128, 128], strides = [1, 1]} : vector<128x256xf32> to vector<128x128xf32>
    %cst_19 = arith.constant -2.000000e+01 : f32
    %cst_20 = arith.constant 2.000000e+00 : f32
    %23 = vector.broadcast %cst_19 : f32 to vector<128x128xf32>
    %24 = arith.maximumf %23, %22 : vector<128x128xf32>
    %25 = vector.broadcast %cst_20 : f32 to vector<128x128xf32>
    %26 = arith.minimumf %25, %24 : vector<128x128xf32>
    %c0_21 = arith.constant 0 : index
    %c0_22 = arith.constant 0 : index
    %27 = vector.load %arg9[%c0_21, %c0_22] : memref<128x128xf32, #tpu.memory_space<vmem>>, vector<128x128xf32>
    tpu.vector_store %arg9[%c0_21, %c0_22], %26 {strides = array<i32>} : memref<128x128xf32, #tpu.memory_space<vmem>>, vector<128x128xf32>,
    return
  }
  func.func @transform_0(%arg0: i32) -> (i32, i32) {
    %c0_i32 = arith.constant 0 : i32
    %c0_i32_0 = arith.constant 0 : i32
    return %arg0, %c0_i32 : i32, i32
  }
  func.func @transform_1(%arg0: i32) -> (i32, i32) {
    %c0_i32 = arith.constant 0 : i32
    %c0_i32_0 = arith.constant 0 : i32
    %c0_i32_1 = arith.constant 0 : i32
    return %c0_i32, %c0_i32_0 : i32, i32
  }
  func.func @transform_2(%arg0: i32) -> (i32, i32) {
    %c0_i32 = arith.constant 0 : i32
    %c0_i32_0 = arith.constant 0 : i32
    %c0_i32_1 = arith.constant 0 : i32
    return %c0_i32, %c0_i32_0 : i32, i32
  }
  func.func @transform_3(%arg0: i32) -> (i32, i32) {
    %c0_i32 = arith.constant 0 : i32
    %c0_i32_0 = arith.constant 0 : i32
    %c0_i32_1 = arith.constant 0 : i32
    return %c0_i32, %c0_i32_0 : i32, i32
  }
  func.func @transform_4(%arg0: i32) -> (i32, i32) {
    %c0_i32 = arith.constant 0 : i32
    %c0_i32_0 = arith.constant 0 : i32
    %c0_i32_1 = arith.constant 0 : i32
    return %c0_i32, %c0_i32_0 : i32, i32
  }
  func.func @transform_5(%arg0: i32) -> (i32, i32) {
    %c0_i32 = arith.constant 0 : i32
    %c0_i32_0 = arith.constant 0 : i32
    %c0_i32_1 = arith.constant 0 : i32
    return %c0_i32, %c0_i32_0 : i32, i32
  }
  func.func @transform_6(%arg0: i32) -> (i32, i32) {
    %c0_i32 = arith.constant 0 : i32
    %c0_i32_0 = arith.constant 0 : i32
    %c0_i32_1 = arith.constant 0 : i32
    return %c0_i32, %c0_i32_0 : i32, i32
  }
  func.func @transform_7(%arg0: i32) -> (i32, i32) {
    %c0_i32 = arith.constant 0 : i32
    %c0_i32_0 = arith.constant 0 : i32
    return %arg0, %c0_i32 : i32, i32
  }
  func.func @transform_8(%arg0: i32) -> (i32, i32) {
    %c0_i32 = arith.constant 0 : i32
    %c0_i32_0 = arith.constant 0 : i32
    return %arg0, %c0_i32 : i32, i32
  }
}

</mosaic_0001>

<llo_original>
// kernel: tpu_custom_call.1
$region0: #{tpu_custom_call.1}
  #allocation0 [shape = 'u32[]', space=smem, size = 0x4, offset = 0x4, fixed_abs, tag = 'smem constant byte address 0x4 - core index']
  #allocation1 [shape = 'u32[144,128]{1,0:T(1,128)}', space=vmem, size = 0x12000, scoped, tag = 'internal scratch']
  %s0 = inlined_call_operand.vmem [shape: f32[256,16], index: 0, kind: input, shape index: {}]
  %s1 = inlined_call_operand.vmem [shape: f32[16,128], index: 1, kind: input, shape index: {}]
  %s2 = inlined_call_operand.vmem [shape: f32[1,128], index: 2, kind: input, shape index: {}]
  %s3 = inlined_call_operand.hbm [shape: f32[128,128], index: 3, kind: input, shape index: {}]
  %s4 = inlined_call_operand.vmem [shape: f32[1,128], index: 4, kind: input, shape index: {}]
  %s5 = inlined_call_operand.vmem [shape: f32[128,256], index: 5, kind: input, shape index: {}]
  %s6 = inlined_call_operand.vmem [shape: f32[1,256], index: 6, kind: input, shape index: {}]
  %s7 = inlined_call_operand.hbm [shape: f32[256,128], index: 7, kind: output, shape index: {0}]
  %s8 = inlined_call_operand.hbm [shape: f32[256,128], index: 8, kind: output, shape index: {1}]
  %9 = xla_tuple %s7, %s8
  %s10 = sld [smem:[#allocation0]]
  $region73: #{tpu_custom_call.1} parent=0
    _
  %s12 = ssub.s32 1, %s10
  %s13 = scalar_select 0, %s12, %s10
  $region1: #{tpu_custom_call.1} parent=0
    #allocation2 [shape = 'u8[65536]{0}', space=vmem, size = 0x10000, scoped, tag = 'input window, operand 3, single buffered']
    #allocation3 [shape = 's32[2]{0}', space=sflag, size = 0x8, scoped, tag = 'scoped memory for tpu_custom_call.1']
    #allocation4 [shape = 's32[2]{0}', space=sflag, size = 0x8, scoped, tag = 'scoped memory for tpu_custom_call.1']
    #allocation5 [shape = 'u8[131072]{0}', space=vmem, size = 0x20000, scoped, tag = 'output window, operand 0']
    #allocation6 [shape = 'u8[131072]{0}', space=vmem, size = 0x20000, scoped, tag = 'output window, operand 1']
    #allocation7 [shape = 's32[2]{0}', space=sflag, size = 0x8, scoped, tag = 'scoped memory for tpu_custom_call.1']
    %14 = vsyncpa [#allocation3], 0
    %15 = vsyncpa [#allocation4], 0
    %s16 = scalar_lea.sflag [#allocation4], 1
    %17 = vsyncpa %s16, 0
    %18 = vsyncpa [#allocation7], 0
    %s19 = scalar_lea.sflag [#allocation7], 1
    %20 = vsyncpa %s19, 0
    loop: start=0, step=1, limit=4
    $region2: #{tpu_custom_call.1} parent=1 // loop_pre_header
      _
    $region3: #{tpu_custom_call.1} parent=1 // loop_header
      %s22 = sphi 0, %s26
      %p23 = scmp.ge.s32.totalorder %s22, 4
      %s32 = sphi 0, %s34
      %s35 = sphi 0, %s32
      %s36 = sphi 0, %s35
      %s52 = sphi 0, %s36
      %s56 = sphi 0, %s56
      %s58 = sphi 0, %s56
      %s59 = sphi 0, %s58
      %s73 = sphi 0, %s59
      %s77 = sphi 0, %s77
      %s79 = sphi 0, %s77
      %s80 = sphi 0, %s79
      %s94 = sphi 0, %s80
      %s98 = sphi 0, %s98
      %s100 = sphi 0, %s98
      %s101 = sphi 0, %s100
      %s115 = sphi 0, %s101
      %s119 = sphi 0, %s119
      %s121 = sphi 0, %s119
      %s122 = sphi 0, %s121
      %s136 = sphi 0, %s122
      %s140 = sphi 0, %s140
      %s142 = sphi 0, %s140
      %s143 = sphi 0, %s142
      %s157 = sphi 0, %s143
      %s161 = sphi 0, %s161
      %s163 = sphi 0, %s161
      %s164 = sphi 0, %s163
      %s178 = sphi 0, %s164
      %s184 = sphi 0, %s186
      %s187 = sphi 0, %s184
      %s188 = sphi 0, %s187
      %s204 = sphi 0, %s188
      %s210 = sphi 0, %s212
      %s213 = sphi 0, %s210
      %s214 = sphi 0, %s213
      %s230 = sphi 0, %s214
    $region4: #{tpu_custom_call.1} parent=1 // loop_header_branch
      %25 = sbr.rel (%p23) target = $region8
    $region5: #{tpu_custom_call.1} parent=1 // loop_body
      %s27 = ssub.s32 %s22, 1
      %s28 = ssub.s32 %s22, 2
      %s29 = sadd.s32 %s22, 1
      %s30 = ssub.s32 %s22, %s29
      %p31 = scmp.eq.s32.totalorder %s30, 0
      %s33 = sadd.s32 %s32, 1
      %s34 = scalar_select %p31, %s32, %s33
      %p37 = pneg %p31
      %p38 = scmp.eq.s32.totalorder %s22, 1
      %p39 = por %p37, %p38
      %p40 = scmp.ne.s32.totalorder %s32, %s35
      %p41 = scmp.eq.s32.totalorder %s22, 0
      %p42 = por %p40, %p41
      %p43 = scmp.ne.s32.totalorder %s32, %s35
      %p44 = scmp.eq.s32.totalorder %s27, 1
      %p45 = por %p43, %p44
      %p46 = scmp.ne.s32.totalorder %s35, %s36
      %p47 = scmp.eq.s32.totalorder %s27, 0
      %p48 = por %p46, %p47
      %p49 = scmp.ne.s32.totalorder %s35, %s36
      %p50 = scmp.eq.s32.totalorder %s28, 1
      %p51 = por %p49, %p50
      %p53 = scmp.ne.s32.totalorder %s36, %s52
      %p54 = scmp.eq.s32.totalorder %s28, 0
      %p55 = por %p53, %p54
      %s57 = sadd.s32 %s56, 1
      %p60 = scmp.eq.s32.totalorder %s22, 1
      %p61 = scmp.ne.s32.totalorder %s56, %s58
      %p62 = scmp.eq.s32.totalorder %s22, 0
      %p63 = por %p61, %p62
      %p64 = scmp.ne.s32.totalorder %s56, %s58
      %p65 = scmp.eq.s32.totalorder %s27, 1
      %p66 = por %p64, %p65
      %p67 = scmp.ne.s32.totalorder %s58, %s59
      %p68 = scmp.eq.s32.totalorder %s27, 0
      %p69 = por %p67, %p68
      %p70 = scmp.ne.s32.totalorder %s58, %s59
      %p71 = scmp.eq.s32.totalorder %s28, 1
      %p72 = por %p70, %p71
      %p74 = scmp.ne.s32.totalorder %s59, %s73
      %p75 = scmp.eq.s32.totalorder %s28, 0
      %p76 = por %p74, %p75
      %s78 = sadd.s32 %s77, 1
      %p81 = scmp.eq.s32.totalorder %s22, 1
      %p82 = scmp.ne.s32.totalorder %s77, %s79
      %p83 = scmp.eq.s32.totalorder %s22, 0
      %p84 = por %p82, %p83
      %p85 = scmp.ne.s32.totalorder %s77, %s79
      %p86 = scmp.eq.s32.totalorder %s27, 1
      %p87 = por %p85, %p86
      %p88 = scmp.ne.s32.totalorder %s79, %s80
      %p89 = scmp.eq.s32.totalorder %s27, 0
      %p90 = por %p88, %p89
      %p91 = scmp.ne.s32.totalorder %s79, %s80
      %p92 = scmp.eq.s32.totalorder %s28, 1
      %p93 = por %p91, %p92
      %p95 = scmp.ne.s32.totalorder %s80, %s94
      %p96 = scmp.eq.s32.totalorder %s28, 0
      %p97 = por %p95, %p96
      %s99 = sadd.s32 %s98, 1
      %p102 = scmp.eq.s32.totalorder %s22, 1
      %p103 = scmp.ne.s32.totalorder %s98, %s100
      %p104 = scmp.eq.s32.totalorder %s22, 0
      %p105 = por %p103, %p104
      %p106 = scmp.ne.s32.totalorder %s98, %s100
      %p107 = scmp.eq.s32.totalorder %s27, 1
      %p108 = por %p106, %p107
      %p109 = scmp.ne.s32.totalorder %s100, %s101
      %p110 = scmp.eq.s32.totalorder %s27, 0
      %p111 = por %p109, %p110
      %p112 = scmp.ne.s32.totalorder %s100, %s101
      %p113 = scmp.eq.s32.totalorder %s28, 1
      %p114 = por %p112, %p113
      %p116 = scmp.ne.s32.totalorder %s101, %s115
      %p117 = scmp.eq.s32.totalorder %s28, 0
      %p118 = por %p116, %p117
      %s120 = sadd.s32 %s119, 1
      %p123 = scmp.eq.s32.totalorder %s22, 1
      %p124 = scmp.ne.s32.totalorder %s119, %s121
      %p125 = scmp.eq.s32.totalorder %s22, 0
      %p126 = por %p124, %p125
      %p127 = scmp.ne.s32.totalorder %s119, %s121
      %p128 = scmp.eq.s32.totalorder %s27, 1
      %p129 = por %p127, %p128
      %p130 = scmp.ne.s32.totalorder %s121, %s122
      %p131 = scmp.eq.s32.totalorder %s27, 0
      %p132 = por %p130, %p131
      %p133 = scmp.ne.s32.totalorder %s121, %s122
      %p134 = scmp.eq.s32.totalorder %s28, 1
      %p135 = por %p133, %p134
      %p137 = scmp.ne.s32.totalorder %s122, %s136
      %p138 = scmp.eq.s32.totalorder %s28, 0
      %p139 = por %p137, %p138
      %s141 = sadd.s32 %s140, 1
      %p144 = scmp.eq.s32.totalorder %s22, 1
      %p145 = scmp.ne.s32.totalorder %s140, %s142
      %p146 = scmp.eq.s32.totalorder %s22, 0
      %p147 = por %p145, %p146
      %p148 = scmp.ne.s32.totalorder %s140, %s142
      %p149 = scmp.eq.s32.totalorder %s27, 1
      %p150 = por %p148, %p149
      %p151 = scmp.ne.s32.totalorder %s142, %s143
      %p152 = scmp.eq.s32.totalorder %s27, 0
      %p153 = por %p151, %p152
      %p154 = scmp.ne.s32.totalorder %s142, %s143
      %p155 = scmp.eq.s32.totalorder %s28, 1
      %p156 = por %p154, %p155
      %p158 = scmp.ne.s32.totalorder %s143, %s157
      %p159 = scmp.eq.s32.totalorder %s28, 0
      %p160 = por %p158, %p159
      %s162 = sadd.s32 %s161, 1
      %p165 = scmp.eq.s32.totalorder %s22, 1
      %p166 = scmp.ne.s32.totalorder %s161, %s163
      %p167 = scmp.eq.s32.totalorder %s22, 0
      %p168 = por %p166, %p167
      %p169 = scmp.ne.s32.totalorder %s161, %s163
      %p170 = scmp.eq.s32.totalorder %s27, 1
      %p171 = por %p169, %p170
      %p172 = scmp.ne.s32.totalorder %s163, %s164
      %p173 = scmp.eq.s32.totalorder %s27, 0
      %p174 = por %p172, %p173
      %p175 = scmp.ne.s32.totalorder %s163, %s164
      %p176 = scmp.eq.s32.totalorder %s28, 1
      %p177 = por %p175, %p176
      %p179 = scmp.ne.s32.totalorder %s164, %s178
      %p180 = scmp.eq.s32.totalorder %s28, 0
      %p181 = por %p179, %p180
      %s182 = ssub.s32 %s22, %s29
      %p183 = scmp.eq.s32.totalorder %s182, 0
      %s185 = sadd.s32 %s184, 1
      %s186 = scalar_select %p183, %s184, %s185
      %p189 = pneg %p183
      %p190 = scmp.eq.s32.totalorder %s22, 1
      %p191 = por %p189, %p190
      %p192 = scmp.ne.s32.totalorder %s184, %s187
      %p193 = scmp.eq.s32.totalorder %s22, 0
      %p194 = por %p192, %p193
      %p195 = scmp.ne.s32.totalorder %s184, %s187
      %p196 = scmp.eq.s32.totalorder %s27, 1
      %p197 = por %p195, %p196
      %p198 = scmp.ne.s32.totalorder %s187, %s188
      %p199 = scmp.eq.s32.totalorder %s27, 0
      %p200 = por %p198, %p199
      %p201 = scmp.ne.s32.totalorder %s187, %s188
      %p202 = scmp.eq.s32.totalorder %s28, 1
      %p203 = por %p201, %p202
      %p205 = scmp.ne.s32.totalorder %s188, %s204
      %p206 = scmp.eq.s32.totalorder %s28, 0
      %p207 = por %p205, %p206
      %s208 = ssub.s32 %s22, %s29
      %p209 = scmp.eq.s32.totalorder %s208, 0
      %s211 = sadd.s32 %s210, 1
      %s212 = scalar_select %p209, %s210, %s211
      %p215 = pneg %p209
      %p216 = scmp.eq.s32.totalorder %s22, 1
      %p217 = por %p215, %p216
      %p218 = scmp.ne.s32.totalorder %s210, %s213
      %p219 = scmp.eq.s32.totalorder %s22, 0
      %p220 = por %p218, %p219
      %p221 = scmp.ne.s32.totalorder %s210, %s213
      %p222 = scmp.eq.s32.totalorder %s27, 1
      %p223 = por %p221, %p222
      %p224 = scmp.ne.s32.totalorder %s213, %s214
      %p225 = scmp.eq.s32.totalorder %s27, 0
      %p226 = por %p224, %p225
      %p227 = scmp.ne.s32.totalorder %s213, %s214
      %p228 = scmp.eq.s32.totalorder %s28, 1
      %p229 = por %p227, %p228
      %p231 = scmp.ne.s32.totalorder %s214, %s230
      %p232 = scmp.eq.s32.totalorder %s28, 0
      %p233 = por %p231, %p232
      %p234 = scmp.le.s32.totalorder 1, %s22
      %p235 = scmp.lt.s32.totalorder %s22, 3
      %p236 = pnand %p234, %p235
      %p237 = pneg %p236
      // Predicated region
      $region9: #{tpu_custom_call.1} parent=5 // pred_check
        _
      $region10: #{tpu_custom_call.1} parent=5 // pred_check_branch
        %239 = sbr.rel (%p236) target = $region12
      $region11: #{tpu_custom_call.1} parent=5 // pred_region
        %s240 = ssub.s32 %s22, 1
        // Predicated region
        $region13: #{tpu_custom_call.1} parent=11 // pred_check
          %p241 = pneg %p69
        $region14: #{tpu_custom_call.1} parent=11 // pred_check_branch
          %243 = sbr.rel (%p241) target = $region16
        $region15: #{tpu_custom_call.1} parent=11 // pred_region
          _
        $region16: #{tpu_custom_call.1} parent=11 // pred_fallthru
          _
        // Predicated region
        $region17: #{tpu_custom_call.1} parent=11 // pred_check
          %p244 = pneg %p90
        $region18: #{tpu_custom_call.1} parent=11 // pred_check_branch
          %246 = sbr.rel (%p244) target = $region20
        $region19: #{tpu_custom_call.1} parent=11 // pred_region
          _
        $region20: #{tpu_custom_call.1} parent=11 // pred_fallthru
          _
        // Predicated region
        $region21: #{tpu_custom_call.1} parent=11 // pred_check
          %p247 = pneg %p111
        $region22: #{tpu_custom_call.1} parent=11 // pred_check_branch
          %249 = sbr.rel (%p247) target = $region24
        $region23: #{tpu_custom_call.1} parent=11 // pred_region
          %s251 = ssub.s32 2048, 2048
          %252 = vsyncadd [#allocation3], %s251
          %s253 = sshll.u32 [#allocation2], 4
          %s254 = int_to_ptr.vmem [resolvable:$true] %s253
          %259 = dma.hbm_to_vmem [thread:$0]  %s3, 2048, %s254, [#allocation3], 128, 128, 8
        $region24: #{tpu_custom_call.1} parent=11 // pred_fallthru
          _
        // Predicated region
        $region25: #{tpu_custom_call.1} parent=11 // pred_check
          %p260 = pneg %p132
        $region26: #{tpu_custom_call.1} parent=11 // pred_check_branch
          %262 = sbr.rel (%p260) target = $region28
        $region27: #{tpu_custom_call.1} parent=11 // pred_region
          _
        $region28: #{tpu_custom_call.1} parent=11 // pred_fallthru
          _
        // Predicated region
        $region29: #{tpu_custom_call.1} parent=11 // pred_check
          %p263 = pneg %p153
        $region30: #{tpu_custom_call.1} parent=11 // pred_check_branch
          %265 = sbr.rel (%p263) target = $region32
        $region31: #{tpu_custom_call.1} parent=11 // pred_region
          _
        $region32: #{tpu_custom_call.1} parent=11 // pred_fallthru
          _
        // Predicated region
        $region33: #{tpu_custom_call.1} parent=11 // pred_check
          %p266 = pneg %p174
        $region34: #{tpu_custom_call.1} parent=11 // pred_check_branch
          %268 = sbr.rel (%p266) target = $region36
        $region35: #{tpu_custom_call.1} parent=11 // pred_region
          _
        $region36: #{tpu_custom_call.1} parent=11 // pred_fallthru
          _
      $region12: #{tpu_custom_call.1} parent=5 // pred_fallthru
        _
      %p269 = scmp.lt.s32.totalorder %s22, 2
      // Predicated region
      $region37: #{tpu_custom_call.1} parent=5 // pred_check
        %p270 = pneg %p269
      $region38: #{tpu_custom_call.1} parent=5 // pred_check_branch
        %272 = sbr.rel (%p270) target = $region40
      $region39: #{tpu_custom_call.1} parent=5 // pred_region
        // Predicated region
        $region41: #{tpu_custom_call.1} parent=39 // pred_check
          %p273 = pneg %p42
        $region42: #{tpu_custom_call.1} parent=39 // pred_check_branch
          %275 = sbr.rel (%p273) target = $region44
        $region43: #{tpu_custom_call.1} parent=39 // pred_region
          %s276 = smul.u32 16, %s22
          %p277 = scmp.lt.s32.totalorder %s276, 31
          %s278 = scalar_select %p277, %s276, 31
          %s279 = smul.addr %s278, 8
          %s280 = scalar_lea.vmem %s0, %s279
          %s281 = smul.u32 16, %s22
        $region44: #{tpu_custom_call.1} parent=39 // pred_fallthru
          _
      $region40: #{tpu_custom_call.1} parent=5 // pred_fallthru
        _
      %p282 = scmp.le.s32.totalorder 1, %s22
      %p283 = scmp.lt.s32.totalorder %s22, 3
      %p284 = pnand %p282, %p283
      %p285 = pneg %p284
      // Predicated region
      $region45: #{tpu_custom_call.1} parent=5 // pred_check
        _
      $region46: #{tpu_custom_call.1} parent=5 // pred_check_branch
        %287 = sbr.rel (%p284) target = $region48
      $region47: #{tpu_custom_call.1} parent=5 // pred_region
        %s288 = ssub.s32 %s22, 1
        // Predicated region
        $region49: #{tpu_custom_call.1} parent=47 // pred_check
          %p289 = pneg %p111
        $region50: #{tpu_custom_call.1} parent=47 // pred_check_branch
          %291 = sbr.rel (%p289) target = $region52
        $region51: #{tpu_custom_call.1} parent=47 // pred_region
          %292 = dma.done [#allocation3], 2048
        $region52: #{tpu_custom_call.1} parent=47 // pred_fallthru
          _
        %s293 = smul.u32 16, %s27
        %p294 = scmp.lt.s32.totalorder %s293, 31
        %s295 = scalar_select %p294, %s293, 31
        %s296 = smul.addr %s295, 8
        %s297 = scalar_lea.vmem %s0, %s296
        %p298 = pneg %p48
        %p299 = pneg %p45
        %p300 = pneg %p69
        %p301 = pneg %p66
        %p302 = pneg %p90
        %p303 = pneg %p87
        %p304 = pneg %p111
        %p305 = pneg %p108
        %p306 = pneg %p132
        %p307 = pneg %p129
        %p308 = pneg %p153
        %p309 = pneg %p150
        %p310 = pneg %p174
        %p311 = pneg %p171
        %p312 = pneg %p200
        %p313 = pneg %p197
        %s314 = sand.u32 %s187, 1
        %s315 = scalar_lea.sflag [#allocation4], %s314
        %s316 = sand.u32 %s187, 1
        %s317 = smul.addr %s316, 128
        %s318 = scalar_lea.vmem [#allocation5], %s317
        %p319 = pneg %p226
        %p320 = pneg %p223
        %s321 = sand.u32 %s213, 1
        %s322 = scalar_lea.sflag [#allocation7], %s321
        %s323 = sand.u32 %s213, 1
        %s324 = smul.addr %s323, 128
        %s325 = scalar_lea.vmem [#allocation6], %s324
        %s326 = smul.u32 16, %s27
        %p327 = scmp.lt.s32.totalorder %s326, 31
        %s328 = scalar_select %p327, %s326, 31
        %s329 = smul.addr %s328, 8
        %s330 = scalar_lea.vmem %s0, %s329
        %s331 = smul.u32 16, %s27
        %s332 = smul.u32 16, %s27
        %s333 = smul.u32 16, %s27
        %v334 = vld [vmem:[%s330] sm:$0xff]
        %v335 = vld [vmem:[%s330 + $0x8] sm:$0xff]
        %v336 = vld [vmem:[%s330 + $0x10] sm:$0xff]
        %v337 = vld [vmem:[%s330 + $0x18] sm:$0xff]
        %v338 = vld [vmem:[%s330 + $0x20] sm:$0xff]
        %v339 = vld [vmem:[%s330 + $0x28] sm:$0xff]
        %v340 = vld [vmem:[%s330 + $0x30] sm:$0xff]
        %v341 = vld [vmem:[%s330 + $0x38] sm:$0xff]
        %v342 = vld [vmem:[%s330 + $0x40] sm:$0xff]
        %v343 = vld [vmem:[%s330 + $0x48] sm:$0xff]
        %v344 = vld [vmem:[%s330 + $0x50] sm:$0xff]
        %v345 = vld [vmem:[%s330 + $0x58] sm:$0xff]
        %v346 = vld [vmem:[%s330 + $0x60] sm:$0xff]
        %v347 = vld [vmem:[%s330 + $0x68] sm:$0xff]
        %v348 = vld [vmem:[%s330 + $0x70] sm:$0xff]
        %v349 = vld [vmem:[%s330 + $0x78] sm:$0xff]
        %v350 = vld [vmem:[%s1] sm:$0xff]
        %v351 = vld [vmem:[%s1 + $0x8] sm:$0xff]
        %v352 = vld [vmem:[%s2] sm:$0x1]
        %v354 = vlaneseq
        %v355 = vshrl.u32 %v354, 7
        %v356 = vsub.s32 0, %v355
        %v357 = vrot.slane %v352, %v356
        %vm359 = vcmask 130048
        %v361 = vsel %vm359, %v334, 0
        %v364 = vsel %vm359, %v335, 0
        %v367 = vsel %vm359, %v336, 0
        %v370 = vsel %vm359, %v337, 0
        %v373 = vsel %vm359, %v338, 0
        %v376 = vsel %vm359, %v339, 0
        %v379 = vsel %vm359, %v340, 0
        %v382 = vsel %vm359, %v341, 0
        %v385 = vsel %vm359, %v342, 0
        %v388 = vsel %vm359, %v343, 0
        %v391 = vsel %vm359, %v344, 0
        %v394 = vsel %vm359, %v345, 0
        %v397 = vsel %vm359, %v346, 0
        %v400 = vsel %vm359, %v347, 0
        %v403 = vsel %vm359, %v348, 0
        %v406 = vsel %vm359, %v349, 0
        %408 = vmatprep.subr.mxu0 0.0
        %409 = vmatpush1.msra.mxu0 %v350
        %410 = vmatprep.subr.mxu0 0.0
        %411 = vmatpush1.msra.mxu0 %v351
        %412 = vmatprep.subr.mxu0 0.0
        %413 = vmatpush1.msra.mxu0 0.0
        %414 = vmatprep.subr.mxu0 0.0
        %415 = vmatpush1.msra.mxu0 0.0
        %416 = vmatprep.subr.mxu0 0.0
        %417 = vmatpush1.msra.mxu0 0.0
        %418 = vmatprep.subr.mxu0 0.0
        %419 = vmatpush1.msra.mxu0 0.0
        %420 = vmatprep.subr.mxu0 0.0
        %421 = vmatpush1.msra.mxu0 0.0
        %422 = vmatprep.subr.mxu0 0.0
        %423 = vmatpush1.msra.mxu0 0.0
        %424 = vmatprep.subr.mxu0 0.0
        %425 = vmatpush1.msra.mxu0 0.0
        %426 = vmatprep.subr.mxu0 0.0
        %427 = vmatpush1.msra.mxu0 0.0
        %428 = vmatprep.subr.mxu0 0.0
        %429 = vmatpush1.msra.mxu0 0.0
        %430 = vmatprep.subr.mxu0 0.0
        %431 = vmatpush1.msra.mxu0 0.0
        %432 = vmatprep.subr.mxu0 0.0
        %433 = vmatpush1.msra.mxu0 0.0
        %434 = vmatprep.subr.mxu0 0.0
        %435 = vmatpush1.msra.mxu0 0.0
        %436 = vmatprep.subr.mxu0 0.0
        %437 = vmatpush1.msra.mxu0 0.0
        %438 = vmatprep.subr.mxu0 0.0
        %439 = vmatpush1.msra.mxu0 0.0
        %440 = vmatprep.subr.mxu0 0.0
        %441 = vmatpush1.msra.mxu0 0.0
        %442 = vmatprep.subr.mxu0 0.0
        %443 = vmatpush1.msra.mxu0 0.0
        %444 = vmatprep.subr.mxu0 0.0
        %445 = vmatpush1.msra.mxu0 0.0
        %446 = vmatprep.subr.mxu0 0.0
        %447 = vmatpush1.msra.mxu0 0.0
        %448 = vmatprep.subr.mxu0 0.0
        %449 = vmatpush1.msra.mxu0 0.0
        %450 = vmatprep.subr.mxu0 0.0
        %451 = vmatpush1.msra.mxu0 0.0
        %452 = vmatprep.subr.mxu0 0.0
        %453 = vmatpush1.msra.mxu0 0.0
        %454 = vmatprep.subr.mxu0 0.0
        %455 = vmatpush1.msra.mxu0 0.0
        %456 = vmatprep.subr.mxu0 0.0
        %457 = vmatpush1.msra.mxu0 0.0
        %458 = vmatprep.subr.mxu0 0.0
        %459 = vmatpush1.msra.mxu0 0.0
        %460 = vmatprep.subr.mxu0 0.0
        %461 = vmatpush1.msra.mxu0 0.0
        %462 = vmatprep.subr.mxu0 0.0
        %463 = vmatpush1.msra.mxu0 0.0
        %464 = vmatprep.subr.mxu0 0.0
        %465 = vmatpush1.msra.mxu0 0.0
        %466 = vmatprep.subr.mxu0 0.0
        %467 = vmatpush1.msra.mxu0 0.0
        %468 = vmatprep.subr.mxu0 0.0
        %469 = vmatpush1.msra.mxu0 0.0
        %470 = vmatprep.subr.mxu0 0.0
        %471 = vmatpush1.msra.mxu0 0.0
        %472 = vmatprep.mubr.f32.mxu0 0.0
        %473 = vmatmul.mubr.f32.gmra.mrb[0].mxu0 %v361
        %v474 = vpop.f32.mrb[0].mxu0
        %v475 = vadd.f32 %v357, %v474
        %v476 = vpop.f32.mrb[0].mxu0
        %477 = vmatprep.mubr.f32.mxu0 0.0
        %478 = vmatmul.mubr.f32.gmra.mrb[0].mxu0 %v364
        %v479 = vpop.f32.mrb[0].mxu0
        %v480 = vadd.f32 %v357, %v479
        %v481 = vpop.f32.mrb[0].mxu0
        %482 = vmatprep.mubr.f32.mxu0 0.0
        %483 = vmatmul.mubr.f32.gmra.mrb[0].mxu0 %v367
        %v484 = vpop.f32.mrb[0].mxu0
        %v485 = vadd.f32 %v357, %v484
        %v486 = vpop.f32.mrb[0].mxu0
        %487 = vmatprep.mubr.f32.mxu0 0.0
        %488 = vmatmul.mubr.f32.gmra.mrb[0].mxu0 %v370
        %v489 = vpop.f32.mrb[0].mxu0
        %v490 = vadd.f32 %v357, %v489
        %v491 = vpop.f32.mrb[0].mxu0
        %492 = vmatprep.mubr.f32.mxu0 0.0
        %493 = vmatmul.mubr.f32.gmra.mrb[0].mxu0 %v373
        %v494 = vpop.f32.mrb[0].mxu0
        %v495 = vadd.f32 %v357, %v494
        %v496 = vpop.f32.mrb[0].mxu0
        %497 = vmatprep.mubr.f32.mxu0 0.0
        %498 = vmatmul.mubr.f32.gmra.mrb[0].mxu0 %v376
        %v499 = vpop.f32.mrb[0].mxu0
        %v500 = vadd.f32 %v357, %v499
        %v501 = vpop.f32.mrb[0].mxu0
        %502 = vmatprep.mubr.f32.mxu0 0.0
        %503 = vmatmul.mubr.f32.gmra.mrb[0].mxu0 %v379
        %v504 = vpop.f32.mrb[0].mxu0
        %v505 = vadd.f32 %v357, %v504
        %v506 = vpop.f32.mrb[0].mxu0
        %507 = vmatprep.mubr.f32.mxu0 0.0
        %508 = vmatmul.mubr.f32.gmra.mrb[0].mxu0 %v382
        %v509 = vpop.f32.mrb[0].mxu0
        %v510 = vadd.f32 %v357, %v509
        %v511 = vpop.f32.mrb[0].mxu0
        %512 = vmatprep.mubr.f32.mxu0 0.0
        %513 = vmatmul.mubr.f32.gmra.mrb[0].mxu0 %v385
        %v514 = vpop.f32.mrb[0].mxu0
        %v515 = vadd.f32 %v357, %v514
        %v516 = vpop.f32.mrb[0].mxu0
        %517 = vmatprep.mubr.f32.mxu0 0.0
        %518 = vmatmul.mubr.f32.gmra.mrb[0].mxu0 %v388
        %v519 = vpop.f32.mrb[0].mxu0
        %v520 = vadd.f32 %v357, %v519
        %v521 = vpop.f32.mrb[0].mxu0
        %522 = vmatprep.mubr.f32.mxu0 0.0
        %523 = vmatmul.mubr.f32.gmra.mrb[0].mxu0 %v391
        %v524 = vpop.f32.mrb[0].mxu0
        %v525 = vadd.f32 %v357, %v524
        %v526 = vpop.f32.mrb[0].mxu0
        %527 = vmatprep.mubr.f32.mxu0 0.0
        %528 = vmatmul.mubr.f32.gmra.mrb[0].mxu0 %v394
        %v529 = vpop.f32.mrb[0].mxu0
        %v530 = vadd.f32 %v357, %v529
        %v531 = vpop.f32.mrb[0].mxu0
        %532 = vmatprep.mubr.f32.mxu0 0.0
        %533 = vmatmul.mubr.f32.gmra.mrb[0].mxu0 %v397
        %v534 = vpop.f32.mrb[0].mxu0
        %v535 = vadd.f32 %v357, %v534
        %v536 = vpop.f32.mrb[0].mxu0
        %537 = vmatprep.mubr.f32.mxu0 0.0
        %538 = vmatmul.mubr.f32.gmra.mrb[0].mxu0 %v400
        %v539 = vpop.f32.mrb[0].mxu0
        %v540 = vadd.f32 %v357, %v539
        %v541 = vpop.f32.mrb[0].mxu0
        %542 = vmatprep.mubr.f32.mxu0 0.0
        %543 = vmatmul.mubr.f32.gmra.mrb[0].mxu0 %v403
        %v544 = vpop.f32.mrb[0].mxu0
        %v545 = vadd.f32 %v357, %v544
        %v546 = vpop.f32.mrb[0].mxu0
        %547 = vmatprep.mubr.f32.mxu0 0.0
        %548 = vmatmul.mubr.f32.gmra.mrb[0].mxu0 %v406
        %v549 = vpop.f32.mrb[0].mxu0
        %v550 = vadd.f32 %v357, %v549
        %v551 = vpop.f32.mrb[0].mxu0
        %552 = vdwg.mxu0
        %v553 = vmax.f32 %v475, 0.0
        %v554 = vmax.f32 %v480, 0.0
        %v555 = vmax.f32 %v485, 0.0
        %v556 = vmax.f32 %v490, 0.0
        %v557 = vmax.f32 %v495, 0.0
        %v558 = vmax.f32 %v500, 0.0
        %v559 = vmax.f32 %v505, 0.0
        %v560 = vmax.f32 %v510, 0.0
        %v561 = vmax.f32 %v515, 0.0
        %v562 = vmax.f32 %v520, 0.0
        %v563 = vmax.f32 %v525, 0.0
        %v564 = vmax.f32 %v530, 0.0
        %v565 = vmax.f32 %v535, 0.0
        %v566 = vmax.f32 %v540, 0.0
        %v567 = vmax.f32 %v545, 0.0
        %v568 = vmax.f32 %v550, 0.0
        %v569 = vld [vmem:[#allocation2] sm:$0xff]
        %v570 = vld [vmem:[#allocation2 + $0x8] sm:$0xff]
        %v571 = vld [vmem:[#allocation2 + $0x10] sm:$0xff]
        %v572 = vld [vmem:[#allocation2 + $0x18] sm:$0xff]
        %v573 = vld [vmem:[#allocation2 + $0x20] sm:$0xff]
        %v574 = vld [vmem:[#allocation2 + $0x28] sm:$0xff]
        %v575 = vld [vmem:[#allocation2 + $0x30] sm:$0xff]
        %v576 = vld [vmem:[#allocation2 + $0x38] sm:$0xff]
        %v577 = vld [vmem:[#allocation2 + $0x40] sm:$0xff]
        %v578 = vld [vmem:[#allocation2 + $0x48] sm:$0xff]
        %v579 = vld [vmem:[#allocation2 + $0x50] sm:$0xff]
        %v580 = vld [vmem:[#allocation2 + $0x58] sm:$0xff]
        %v581 = vld [vmem:[#allocation2 + $0x60] sm:$0xff]
        %v582 = vld [vmem:[#allocation2 + $0x68] sm:$0xff]
        %v583 = vld [vmem:[#allocation2 + $0x70] sm:$0xff]
        %v584 = vld [vmem:[#allocation2 + $0x78] sm:$0xff]
        %v585 = vld [vmem:[%s4] sm:$0x1]
        %v587 = vlaneseq
        %v588 = vshrl.u32 %v587, 7
        %v589 = vsub.s32 0, %v588
        %v590 = vrot.slane %v585, %v589
        %592 = vmatprep.subr.mxu0 0.0
        %593 = vmatpush1.msra.mxu0 %v569
        %594 = vmatprep.subr.mxu0 0.0
        %595 = vmatpush1.msra.mxu0 %v570
        %596 = vmatprep.subr.mxu0 0.0
        %597 = vmatpush1.msra.mxu0 %v571
        %598 = vmatprep.subr.mxu0 0.0
        %599 = vmatpush1.msra.mxu0 %v572
        %600 = vmatprep.subr.mxu0 0.0
        %601 = vmatpush1.msra.mxu0 %v573
        %602 = vmatprep.subr.mxu0 0.0
        %603 = vmatpush1.msra.mxu0 %v574
        %604 = vmatprep.subr.mxu0 0.0
        %605 = vmatpush1.msra.mxu0 %v575
        %606 = vmatprep.subr.mxu0 0.0
        %607 = vmatpush1.msra.mxu0 %v576
        %608 = vmatprep.subr.mxu0 0.0
        %609 = vmatpush1.msra.mxu0 %v577
        %610 = vmatprep.subr.mxu0 0.0
        %611 = vmatpush1.msra.mxu0 %v578
        %612 = vmatprep.subr.mxu0 0.0
        %613 = vmatpush1.msra.mxu0 %v579
        %614 = vmatprep.subr.mxu0 0.0
        %615 = vmatpush1.msra.mxu0 %v580
        %616 = vmatprep.subr.mxu0 0.0
        %617 = vmatpush1.msra.mxu0 %v581
        %618 = vmatprep.subr.mxu0 0.0
        %619 = vmatpush1.msra.mxu0 %v582
        %620 = vmatprep.subr.mxu0 0.0
        %621 = vmatpush1.msra.mxu0 %v583
        %622 = vmatprep.subr.mxu0 0.0
        %623 = vmatpush1.msra.mxu0 %v584
        %624 = vmatprep.subr.mxu0 0.0
        %625 = vmatpush1.msra.mxu0 0.0
        %626 = vmatprep.subr.mxu0 0.0
        %627 = vmatpush1.msra.mxu0 0.0
        %628 = vmatprep.subr.mxu0 0.0
        %629 = vmatpush1.msra.mxu0 0.0
        %630 = vmatprep.subr.mxu0 0.0
        %631 = vmatpush1.msra.mxu0 0.0
        %632 = vmatprep.subr.mxu0 0.0
        %633 = vmatpush1.msra.mxu0 0.0
        %634 = vmatprep.subr.mxu0 0.0
        %635 = vmatpush1.msra.mxu0 0.0
        %636 = vmatprep.subr.mxu0 0.0
        %637 = vmatpush1.msra.mxu0 0.0
        %638 = vmatprep.subr.mxu0 0.0
        %639 = vmatpush1.msra.mxu0 0.0
        %640 = vmatprep.subr.mxu0 0.0
        %641 = vmatpush1.msra.mxu0 0.0
        %642 = vmatprep.subr.mxu0 0.0
        %643 = vmatpush1.msra.mxu0 0.0
        %644 = vmatprep.subr.mxu0 0.0
        %645 = vmatpush1.msra.mxu0 0.0
        %646 = vmatprep.subr.mxu0 0.0
        %647 = vmatpush1.msra.mxu0 0.0
        %648 = vmatprep.subr.mxu0 0.0
        %649 = vmatpush1.msra.mxu0 0.0
        %650 = vmatprep.subr.mxu0 0.0
        %651 = vmatpush1.msra.mxu0 0.0
        %652 = vmatprep.subr.mxu0 0.0
        %653 = vmatpush1.msra.mxu0 0.0
        %654 = vmatprep.subr.mxu0 0.0
        %655 = vmatpush1.msra.mxu0 0.0
        %656 = vmatprep.mubr.f32.mxu0 0.0
        %657 = vmatmul.mubr.f32.gmra.mrb[0].mxu0 %v553
        %v658 = vpop.f32.mrb[0].mxu0
        %v659 = vadd.f32 %v590, %v658
        %v660 = vpop.f32.mrb[0].mxu0
        %661 = vmatprep.mubr.f32.mxu0 0.0
        %662 = vmatmul.mubr.f32.gmra.mrb[0].mxu0 %v554
        %v663 = vpop.f32.mrb[0].mxu0
        %v664 = vadd.f32 %v590, %v663
        %v665 = vpop.f32.mrb[0].mxu0
        %666 = vmatprep.mubr.f32.mxu0 0.0
        %667 = vmatmul.mubr.f32.gmra.mrb[0].mxu0 %v555
        %v668 = vpop.f32.mrb[0].mxu0
        %v669 = vadd.f32 %v590, %v668
        %v670 = vpop.f32.mrb[0].mxu0
        %671 = vmatprep.mubr.f32.mxu0 0.0
        %672 = vmatmul.mubr.f32.gmra.mrb[0].mxu0 %v556
        %v673 = vpop.f32.mrb[0].mxu0
        %v674 = vadd.f32 %v590, %v673
        %v675 = vpop.f32.mrb[0].mxu0
        %676 = vmatprep.mubr.f32.mxu0 0.0
        %677 = vmatmul.mubr.f32.gmra.mrb[0].mxu0 %v557
        %v678 = vpop.f32.mrb[0].mxu0
        %v679 = vadd.f32 %v590, %v678
        %v680 = vpop.f32.mrb[0].mxu0
        %681 = vmatprep.mubr.f32.mxu0 0.0
        %682 = vmatmul.mubr.f32.gmra.mrb[0].mxu0 %v558
        %v683 = vpop.f32.mrb[0].mxu0
        %v684 = vadd.f32 %v590, %v683
        %v685 = vpop.f32.mrb[0].mxu0
        %686 = vmatprep.mubr.f32.mxu0 0.0
        %687 = vmatmul.mubr.f32.gmra.mrb[0].mxu0 %v559
        %v688 = vpop.f32.mrb[0].mxu0
        %v689 = vadd.f32 %v590, %v688
        %v690 = vpop.f32.mrb[0].mxu0
        %691 = vmatprep.mubr.f32.mxu0 0.0
        %692 = vmatmul.mubr.f32.gmra.mrb[0].mxu0 %v560
        %v693 = vpop.f32.mrb[0].mxu0
        %v694 = vadd.f32 %v590, %v693
        %v695 = vpop.f32.mrb[0].mxu0
        %696 = vmatprep.mubr.f32.mxu0 0.0
        %697 = vmatmul.mubr.f32.gmra.mrb[0].mxu0 %v561
        %v698 = vpop.f32.mrb[0].mxu0
        %v699 = vadd.f32 %v590, %v698
        %v700 = vpop.f32.mrb[0].mxu0
        %701 = vmatprep.mubr.f32.mxu0 0.0
        %702 = vmatmul.mubr.f32.gmra.mrb[0].mxu0 %v562
        %v703 = vpop.f32.mrb[0].mxu0
        %v704 = vadd.f32 %v590, %v703
        %v705 = vpop.f32.mrb[0].mxu0
        %706 = vmatprep.mubr.f32.mxu0 0.0
        %707 = vmatmul.mubr.f32.gmra.mrb[0].mxu0 %v563
        %v708 = vpop.f32.mrb[0].mxu0
        %v709 = vadd.f32 %v590, %v708
        %v710 = vpop.f32.mrb[0].mxu0
        %711 = vmatprep.mubr.f32.mxu0 0.0
        %712 = vmatmul.mubr.f32.gmra.mrb[0].mxu0 %v564
        %v713 = vpop.f32.mrb[0].mxu0
        %v714 = vadd.f32 %v590, %v713
        %v715 = vpop.f32.mrb[0].mxu0
        %716 = vmatprep.mubr.f32.mxu0 0.0
        %717 = vmatmul.mubr.f32.gmra.mrb[0].mxu0 %v565
        %v718 = vpop.f32.mrb[0].mxu0
        %v719 = vadd.f32 %v590, %v718
        %v720 = vpop.f32.mrb[0].mxu0
        %721 = vmatprep.mubr.f32.mxu0 0.0
        %722 = vmatmul.mubr.f32.gmra.mrb[0].mxu0 %v566
        %v723 = vpop.f32.mrb[0].mxu0
        %v724 = vadd.f32 %v590, %v723
        %v725 = vpop.f32.mrb[0].mxu0
        %726 = vmatprep.mubr.f32.mxu0 0.0
        %727 = vmatmul.mubr.f32.gmra.mrb[0].mxu0 %v567
        %v728 = vpop.f32.mrb[0].mxu0
        %v729 = vadd.f32 %v590, %v728
        %v730 = vpop.f32.mrb[0].mxu0
        %731 = vmatprep.mubr.f32.mxu0 0.0
        %732 = vmatmul.mubr.f32.gmra.mrb[0].mxu0 %v568
        %v733 = vpop.f32.mrb[0].mxu0
        %v734 = vadd.f32 %v590, %v733
        %v735 = vpop.f32.mrb[0].mxu0
        %736 = vdwg.mxu0
        %v737 = vmax.f32 %v659, 0.0
        %v738 = vmax.f32 %v664, 0.0
        %v739 = vmax.f32 %v669, 0.0
        %v740 = vmax.f32 %v674, 0.0
        %v741 = vmax.f32 %v679, 0.0
        %v742 = vmax.f32 %v684, 0.0
        %v743 = vmax.f32 %v689, 0.0
        %v744 = vmax.f32 %v694, 0.0
        %v745 = vmax.f32 %v699, 0.0
        %v746 = vmax.f32 %v704, 0.0
        %v747 = vmax.f32 %v709, 0.0
        %v748 = vmax.f32 %v714, 0.0
        %v749 = vmax.f32 %v719, 0.0
        %v750 = vmax.f32 %v724, 0.0
        %v751 = vmax.f32 %v729, 0.0
        %v752 = vmax.f32 %v734, 0.0
        %v753 = vld [vmem:[%s5] sm:$0xff]
        %v754 = vld [vmem:[%s5 + $0x8] sm:$0xff]
        %v755 = vld [vmem:[%s5 + $0x10] sm:$0xff]
        %v756 = vld [vmem:[%s5 + $0x18] sm:$0xff]
        %v757 = vld [vmem:[%s5 + $0x20] sm:$0xff]
        %v758 = vld [vmem:[%s5 + $0x28] sm:$0xff]
        %v759 = vld [vmem:[%s5 + $0x30] sm:$0xff]
        %v760 = vld [vmem:[%s5 + $0x38] sm:$0xff]
        %v761 = vld [vmem:[%s5 + $0x40] sm:$0xff]
        %v762 = vld [vmem:[%s5 + $0x48] sm:$0xff]
        %v763 = vld [vmem:[%s5 + $0x50] sm:$0xff]
        %v764 = vld [vmem:[%s5 + $0x58] sm:$0xff]
        %v765 = vld [vmem:[%s5 + $0x60] sm:$0xff]
        %v766 = vld [vmem:[%s5 + $0x68] sm:$0xff]
        %v767 = vld [vmem:[%s5 + $0x70] sm:$0xff]
        %v768 = vld [vmem:[%s5 + $0x78] sm:$0xff]
        %v769 = vld [vmem:[%s5 + $0x80] sm:$0xff]
        %v770 = vld [vmem:[%s5 + $0x88] sm:$0xff]
        %v771 = vld [vmem:[%s5 + $0x90] sm:$0xff]
        %v772 = vld [vmem:[%s5 + $0x98] sm:$0xff]
        %v773 = vld [vmem:[%s5 + $0xa0] sm:$0xff]
        %v774 = vld [vmem:[%s5 + $0xa8] sm:$0xff]
        %v775 = vld [vmem:[%s5 + $0xb0] sm:$0xff]
        %v776 = vld [vmem:[%s5 + $0xb8] sm:$0xff]
        %v777 = vld [vmem:[%s5 + $0xc0] sm:$0xff]
        %v778 = vld [vmem:[%s5 + $0xc8] sm:$0xff]
        %v779 = vld [vmem:[%s5 + $0xd0] sm:$0xff]
        %v780 = vld [vmem:[%s5 + $0xd8] sm:$0xff]
        %v781 = vld [vmem:[%s5 + $0xe0] sm:$0xff]
        %v782 = vld [vmem:[%s5 + $0xe8] sm:$0xff]
        %v783 = vld [vmem:[%s5 + $0xf0] sm:$0xff]
        %v784 = vld [vmem:[%s5 + $0xf8] sm:$0xff]
        %v785 = vld [vmem:[%s6] sm:$0x3]
        %v787 = vlaneseq
        %v788 = vshrl.u32 %v787, 7
        %v789 = vsub.s32 0, %v788
        %v790 = vrot.slane %v785, %v789
        %v791 = vlaneseq
        %v792 = vshrl.u32 %v791, 7
        %v793 = vsub.s32 1, %v792
        %v794 = vrot.slane %v785, %v793
        %797 = vmatprep.subr.mxu0 %v754
        %798 = vmatpush1.msra.mxu0 %v753
        %799 = vmatprep.subr.mxu0 %v756
        %800 = vmatpush1.msra.mxu0 %v755
        %801 = vmatprep.subr.mxu0 %v758
        %802 = vmatpush1.msra.mxu0 %v757
        %803 = vmatprep.subr.mxu0 %v760
        %804 = vmatpush1.msra.mxu0 %v759
        %805 = vmatprep.subr.mxu0 %v762
        %806 = vmatpush1.msra.mxu0 %v761
        %807 = vmatprep.subr.mxu0 %v764
        %808 = vmatpush1.msra.mxu0 %v763
        %809 = vmatprep.subr.mxu0 %v766
        %810 = vmatpush1.msra.mxu0 %v765
        %811 = vmatprep.subr.mxu0 %v768
        %812 = vmatpush1.msra.mxu0 %v767
        %813 = vmatprep.subr.mxu0 %v770
        %814 = vmatpush1.msra.mxu0 %v769
        %815 = vmatprep.subr.mxu0 %v772
        %816 = vmatpush1.msra.mxu0 %v771
        %817 = vmatprep.subr.mxu0 %v774
        %818 = vmatpush1.msra.mxu0 %v773
        %819 = vmatprep.subr.mxu0 %v776
        %820 = vmatpush1.msra.mxu0 %v775
        %821 = vmatprep.subr.mxu0 %v778
        %822 = vmatpush1.msra.mxu0 %v777
        %823 = vmatprep.subr.mxu0 %v780
        %824 = vmatpush1.msra.mxu0 %v779
        %825 = vmatprep.subr.mxu0 %v782
        %826 = vmatpush1.msra.mxu0 %v781
        %827 = vmatprep.subr.mxu0 %v784
        %828 = vmatpush1.msra.mxu0 %v783
        %829 = vmatprep.subr.mxu0 0.0
        %830 = vmatpush1.msra.mxu0 0.0
        %831 = vmatprep.subr.mxu0 0.0
        %832 = vmatpush1.msra.mxu0 0.0
        %833 = vmatprep.subr.mxu0 0.0
        %834 = vmatpush1.msra.mxu0 0.0
        %835 = vmatprep.subr.mxu0 0.0
        %836 = vmatpush1.msra.mxu0 0.0
        %837 = vmatprep.subr.mxu0 0.0
        %838 = vmatpush1.msra.mxu0 0.0
        %839 = vmatprep.subr.mxu0 0.0
        %840 = vmatpush1.msra.mxu0 0.0
        %841 = vmatprep.subr.mxu0 0.0
        %842 = vmatpush1.msra.mxu0 0.0
        %843 = vmatprep.subr.mxu0 0.0
        %844 = vmatpush1.msra.mxu0 0.0
        %845 = vmatprep.subr.mxu0 0.0
        %846 = vmatpush1.msra.mxu0 0.0
        %847 = vmatprep.subr.mxu0 0.0
        %848 = vmatpush1.msra.mxu0 0.0
        %849 = vmatprep.subr.mxu0 0.0
        %850 = vmatpush1.msra.mxu0 0.0
        %851 = vmatprep.subr.mxu0 0.0
        %852 = vmatpush1.msra.mxu0 0.0
        %853 = vmatprep.subr.mxu0 0.0
        %854 = vmatpush1.msra.mxu0 0.0
        %855 = vmatprep.subr.mxu0 0.0
        %856 = vmatpush1.msra.mxu0 0.0
        %857 = vmatprep.subr.mxu0 0.0
        %858 = vmatpush1.msra.mxu0 0.0
        %859 = vmatprep.subr.mxu0 0.0
        %860 = vmatpush1.msra.mxu0 0.0
        %861 = vmatprep.mubr.f32.mxu0 0.0
        %862 = vmatmul.mubr.f32.gmra.mrb[0].mxu0 %v737
        %v863 = vpop.f32.mrb[0].mxu0
        %v864 = vadd.f32 %v790, %v863
        %v865 = vpop.f32.mrb[0].mxu0
        %v866 = vadd.f32 %v794, %v865
        %867 = vmatprep.mubr.f32.mxu0 0.0
        %868 = vmatmul.mubr.f32.gmra.mrb[0].mxu0 %v738
        %v869 = vpop.f32.mrb[0].mxu0
        %v870 = vadd.f32 %v790, %v869
        %v871 = vpop.f32.mrb[0].mxu0
        %v872 = vadd.f32 %v794, %v871
        %873 = vmatprep.mubr.f32.mxu0 0.0
        %874 = vmatmul.mubr.f32.gmra.mrb[0].mxu0 %v739
        %v875 = vpop.f32.mrb[0].mxu0
        %v876 = vadd.f32 %v790, %v875
        %v877 = vpop.f32.mrb[0].mxu0
        %v878 = vadd.f32 %v794, %v877
        %879 = vmatprep.mubr.f32.mxu0 0.0
        %880 = vmatmul.mubr.f32.gmra.mrb[0].mxu0 %v740
        %v881 = vpop.f32.mrb[0].mxu0
        %v882 = vadd.f32 %v790, %v881
        %v883 = vpop.f32.mrb[0].mxu0
        %v884 = vadd.f32 %v794, %v883
        %885 = vmatprep.mubr.f32.mxu0 0.0
        %886 = vmatmul.mubr.f32.gmra.mrb[0].mxu0 %v741
        %v887 = vpop.f32.mrb[0].mxu0
        %v888 = vadd.f32 %v790, %v887
        %v889 = vpop.f32.mrb[0].mxu0
        %v890 = vadd.f32 %v794, %v889
        %891 = vmatprep.mubr.f32.mxu0 0.0
        %892 = vmatmul.mubr.f32.gmra.mrb[0].mxu0 %v742
        %v893 = vpop.f32.mrb[0].mxu0
        %v894 = vadd.f32 %v790, %v893
        %v895 = vpop.f32.mrb[0].mxu0
        %v896 = vadd.f32 %v794, %v895
        %897 = vmatprep.mubr.f32.mxu0 0.0
        %898 = vmatmul.mubr.f32.gmra.mrb[0].mxu0 %v743
        %v899 = vpop.f32.mrb[0].mxu0
        %v900 = vadd.f32 %v790, %v899
        %v901 = vpop.f32.mrb[0].mxu0
        %v902 = vadd.f32 %v794, %v901
        %903 = vmatprep.mubr.f32.mxu0 0.0
        %904 = vmatmul.mubr.f32.gmra.mrb[0].mxu0 %v744
        %v905 = vpop.f32.mrb[0].mxu0
        %v906 = vadd.f32 %v790, %v905
        %v907 = vpop.f32.mrb[0].mxu0
        %v908 = vadd.f32 %v794, %v907
        %909 = vmatprep.mubr.f32.mxu0 0.0
        %910 = vmatmul.mubr.f32.gmra.mrb[0].mxu0 %v745
        %v911 = vpop.f32.mrb[0].mxu0
        %v912 = vadd.f32 %v790, %v911
        %v913 = vpop.f32.mrb[0].mxu0
        %v914 = vadd.f32 %v794, %v913
        %915 = vmatprep.mubr.f32.mxu0 0.0
        %916 = vmatmul.mubr.f32.gmra.mrb[0].mxu0 %v746
        %v917 = vpop.f32.mrb[0].mxu0
        %v918 = vadd.f32 %v790, %v917
        %v919 = vpop.f32.mrb[0].mxu0
        %v920 = vadd.f32 %v794, %v919
        %921 = vmatprep.mubr.f32.mxu0 0.0
        %922 = vmatmul.mubr.f32.gmra.mrb[0].mxu0 %v747
        %v923 = vpop.f32.mrb[0].mxu0
        %v924 = vadd.f32 %v790, %v923
        %v925 = vpop.f32.mrb[0].mxu0
        %v926 = vadd.f32 %v794, %v925
        %927 = vmatprep.mubr.f32.mxu0 0.0
        %928 = vmatmul.mubr.f32.gmra.mrb[0].mxu0 %v748
        %v929 = vpop.f32.mrb[0].mxu0
        %v930 = vadd.f32 %v790, %v929
        %v931 = vpop.f32.mrb[0].mxu0
        %v932 = vadd.f32 %v794, %v931
        %933 = vmatprep.mubr.f32.mxu0 0.0
        %934 = vmatmul.mubr.f32.gmra.mrb[0].mxu0 %v749
        %v935 = vpop.f32.mrb[0].mxu0
        %v936 = vadd.f32 %v790, %v935
        %v937 = vpop.f32.mrb[0].mxu0
        %v938 = vadd.f32 %v794, %v937
        %939 = vmatprep.mubr.f32.mxu0 0.0
        %940 = vmatmul.mubr.f32.gmra.mrb[0].mxu0 %v750
        %v941 = vpop.f32.mrb[0].mxu0
        %v942 = vadd.f32 %v790, %v941
        %v943 = vpop.f32.mrb[0].mxu0
        %v944 = vadd.f32 %v794, %v943
        %945 = vmatprep.mubr.f32.mxu0 0.0
        %946 = vmatmul.mubr.f32.gmra.mrb[0].mxu0 %v751
        %v947 = vpop.f32.mrb[0].mxu0
        %v948 = vadd.f32 %v790, %v947
        %v949 = vpop.f32.mrb[0].mxu0
        %v950 = vadd.f32 %v794, %v949
        %951 = vmatprep.mubr.f32.mxu0 0.0
        %952 = vmatmul.mubr.f32.gmra.mrb[0].mxu0 %v752
        %v953 = vpop.f32.mrb[0].mxu0
        %v954 = vadd.f32 %v790, %v953
        %v955 = vpop.f32.mrb[0].mxu0
        %v956 = vadd.f32 %v794, %v955
        %957 = vdwg.mxu0
        %958 = vst [vmem:[%s318] sm:$0xff] %v864
        %959 = vst [vmem:[%s318 + $0x8] sm:$0xff] %v870
        %960 = vst [vmem:[%s318 + $0x10] sm:$0xff] %v876
        %961 = vst [vmem:[%s318 + $0x18] sm:$0xff] %v882
        %962 = vst [vmem:[%s318 + $0x20] sm:$0xff] %v888
        %963 = vst [vmem:[%s318 + $0x28] sm:$0xff] %v894
        %964 = vst [vmem:[%s318 + $0x30] sm:$0xff] %v900
        %965 = vst [vmem:[%s318 + $0x38] sm:$0xff] %v906
        %966 = vst [vmem:[%s318 + $0x40] sm:$0xff] %v912
        %967 = vst [vmem:[%s318 + $0x48] sm:$0xff] %v918
        %968 = vst [vmem:[%s318 + $0x50] sm:$0xff] %v924
        %969 = vst [vmem:[%s318 + $0x58] sm:$0xff] %v930
        %970 = vst [vmem:[%s318 + $0x60] sm:$0xff] %v936
        %971 = vst [vmem:[%s318 + $0x68] sm:$0xff] %v942
        %972 = vst [vmem:[%s318 + $0x70] sm:$0xff] %v948
        %973 = vst [vmem:[%s318 + $0x78] sm:$0xff] %v954
        %v974 = vmax.f32 %v866, -20.0
        %v975 = vmax.f32 %v872, -20.0
        %v976 = vmax.f32 %v878, -20.0
        %v977 = vmax.f32 %v884, -20.0
        %v978 = vmax.f32 %v890, -20.0
        %v979 = vmax.f32 %v896, -20.0
        %v980 = vmax.f32 %v902, -20.0
        %v981 = vmax.f32 %v908, -20.0
        %v982 = vmax.f32 %v914, -20.0
        %v983 = vmax.f32 %v920, -20.0
        %v984 = vmax.f32 %v926, -20.0
        %v985 = vmax.f32 %v932, -20.0
        %v986 = vmax.f32 %v938, -20.0
        %v987 = vmax.f32 %v944, -20.0
        %v988 = vmax.f32 %v950, -20.0
        %v989 = vmax.f32 %v956, -20.0
        %v990 = vmin.f32 %v974, 2.0
        %v991 = vmin.f32 %v975, 2.0
        %v992 = vmin.f32 %v976, 2.0
        %v993 = vmin.f32 %v977, 2.0
        %v994 = vmin.f32 %v978, 2.0
        %v995 = vmin.f32 %v979, 2.0
        %v996 = vmin.f32 %v980, 2.0
        %v997 = vmin.f32 %v981, 2.0
        %v998 = vmin.f32 %v982, 2.0
        %v999 = vmin.f32 %v983, 2.0
        %v1000 = vmin.f32 %v984, 2.0
        %v1001 = vmin.f32 %v985, 2.0
        %v1002 = vmin.f32 %v986, 2.0
        %v1003 = vmin.f32 %v987, 2.0
        %v1004 = vmin.f32 %v988, 2.0
        %v1005 = vmin.f32 %v989, 2.0
        %1006 = vst [vmem:[%s325] sm:$0xff] %v990
        %1007 = vst [vmem:[%s325 + $0x8] sm:$0xff] %v991
        %1008 = vst [vmem:[%s325 + $0x10] sm:$0xff] %v992
        %1009 = vst [vmem:[%s325 + $0x18] sm:$0xff] %v993
        %1010 = vst [vmem:[%s325 + $0x20] sm:$0xff] %v994
        %1011 = vst [vmem:[%s325 + $0x28] sm:$0xff] %v995
        %1012 = vst [vmem:[%s325 + $0x30] sm:$0xff] %v996
        %1013 = vst [vmem:[%s325 + $0x38] sm:$0xff] %v997
        %1014 = vst [vmem:[%s325 + $0x40] sm:$0xff] %v998
        %1015 = vst [vmem:[%s325 + $0x48] sm:$0xff] %v999
        %1016 = vst [vmem:[%s325 + $0x50] sm:$0xff] %v1000
        %1017 = vst [vmem:[%s325 + $0x58] sm:$0xff] %v1001
        %1018 = vst [vmem:[%s325 + $0x60] sm:$0xff] %v1002
        %1019 = vst [vmem:[%s325 + $0x68] sm:$0xff] %v1003
        %1020 = vst [vmem:[%s325 + $0x70] sm:$0xff] %v1004
        %1021 = vst [vmem:[%s325 + $0x78] sm:$0xff] %v1005
        %s1022 = sand.u32 %s187, 1
        %s1023 = scalar_lea.sflag [#allocation4], %s1022
        %s1024 = sand.u32 %s187, 1
        %s1025 = smul.addr %s1024, 128
        %s1026 = scalar_lea.vmem [#allocation5], %s1025
        %s1027 = sand.u32 %s213, 1
        %s1028 = scalar_lea.sflag [#allocation7], %s1027
        %s1029 = sand.u32 %s213, 1
        %s1030 = smul.addr %s1029, 128
        %s1031 = scalar_lea.vmem [#allocation6], %s1030
        // Predicated region
        $region53: #{tpu_custom_call.1} parent=47 // pred_check
          %p1032 = pneg %p197
        $region54: #{tpu_custom_call.1} parent=47 // pred_check_branch
          %1034 = sbr.rel (%p1032) target = $region56
        $region55: #{tpu_custom_call.1} parent=47 // pred_region
          %s1035 = smul.u32 16, %s27
          %s1037 = ssub.s32 2048, 2048
          %1038 = vsyncadd %s1023, %s1037
          %s1039 = smul.addr %s1035, 128
          %s1040 = scalar_lea.hbm %s7, %s1039
          %s1041 = sshll.u32 %s1026, 4
          %s1042 = int_to_ptr.vmem [resolvable:$true] %s1041
          %1047 = dma.vmem_to_hbm [thread:$0]  %s1042, 2048, %s1040, %s1023, 128, 128, 8
        $region56: #{tpu_custom_call.1} parent=47 // pred_fallthru
          _
        // Predicated region
        $region57: #{tpu_custom_call.1} parent=47 // pred_check
          %p1048 = pneg %p223
        $region58: #{tpu_custom_call.1} parent=47 // pred_check_branch
          %1050 = sbr.rel (%p1048) target = $region60
        $region59: #{tpu_custom_call.1} parent=47 // pred_region
          %s1051 = smul.u32 16, %s27
          %s1053 = ssub.s32 2048, 2048
          %1054 = vsyncadd %s1028, %s1053
          %s1055 = smul.addr %s1051, 128
          %s1056 = scalar_lea.hbm %s8, %s1055
          %s1057 = sshll.u32 %s1031, 4
          %s1058 = int_to_ptr.vmem [resolvable:$true] %s1057
          %1063 = dma.vmem_to_hbm [thread:$0]  %s1058, 2048, %s1056, %s1028, 128, 128, 8
        $region60: #{tpu_custom_call.1} parent=47 // pred_fallthru
          _
      $region48: #{tpu_custom_call.1} parent=5 // pred_fallthru
        _
      %p1064 = scmp.le.s32.totalorder 2, %s22
      // Predicated region
      $region61: #{tpu_custom_call.1} parent=5 // pred_check
        %p1065 = pneg %p1064
      $region62: #{tpu_custom_call.1} parent=5 // pred_check_branch
        %1067 = sbr.rel (%p1065) target = $region64
      $region63: #{tpu_custom_call.1} parent=5 // pred_region
        %s1068 = ssub.s32 %s22, 2
        // Predicated region
        $region65: #{tpu_custom_call.1} parent=63 // pred_check
          %p1069 = pneg %p203
        $region66: #{tpu_custom_call.1} parent=63 // pred_check_branch
          %1071 = sbr.rel (%p1069) target = $region68
        $region67: #{tpu_custom_call.1} parent=63 // pred_region
          %s1072 = sand.u32 %s188, 1
          %s1073 = scalar_lea.sflag [#allocation4], %s1072
          %s1074 = sand.u32 %s188, 1
          %s1075 = smul.addr %s1074, 128
          %s1076 = scalar_lea.vmem [#allocation5], %s1075
          %1077 = dma.done %s1073, 2048
        $region68: #{tpu_custom_call.1} parent=63 // pred_fallthru
          _
        // Predicated region
        $region69: #{tpu_custom_call.1} parent=63 // pred_check
          %p1078 = pneg %p229
        $region70: #{tpu_custom_call.1} parent=63 // pred_check_branch
          %1080 = sbr.rel (%p1078) target = $region72
        $region71: #{tpu_custom_call.1} parent=63 // pred_region
          %s1081 = sand.u32 %s214, 1
          %s1082 = scalar_lea.sflag [#allocation7], %s1081
          %s1083 = sand.u32 %s214, 1
          %s1084 = smul.addr %s1083, 128
          %s1085 = scalar_lea.vmem [#allocation6], %s1084
          %1086 = dma.done %s1082, 2048
        $region72: #{tpu_custom_call.1} parent=63 // pred_fallthru
          _
      $region64: #{tpu_custom_call.1} parent=5 // pred_fallthru
        _
    $region6: #{tpu_custom_call.1} parent=1 // loop_footer
      %s26 = sadd.s32 1, %s22
    $region7: #{tpu_custom_call.1} parent=1 // loop_footer_branch
      %21 = sbr.rel target = $region3
    $region8: #{tpu_custom_call.1} parent=1 // loop_exit
      _
    %1087 = vsyncpa [#allocation3], 1
    %s1088 = scalar_lea.sflag [#allocation3], 1
    %1089 = vsyncpa %s1088, 1
    %1090 = vsyncpa [#allocation4], 1
    %s1091 = scalar_lea.sflag [#allocation4], 1
    %1092 = vsyncpa %s1091, 1
    %1093 = vsyncpa [#allocation7], 1
    %s1094 = scalar_lea.sflag [#allocation7], 1
    %1095 = vsyncpa %s1094, 1

</llo_original>
